<compile_context>
chip_gen: v7x
topology: tpu7x:2x2x1
jax: 0.10.0
libtpu: 0.0.40
codegen_flags: <defaults>
</compile_context>

<pallas_src>
import jax
import jax.numpy as jnp
from jax.experimental import pallas as pl
from jax.experimental.pallas import tpu as pltpu


def projection_kernel(x_hbm, w1_ref, gb_ref, w2_ref, out_ref, x_vmem):
    k = pl.program_id(0)

    @pl.when(k == 0)
    def _():
        # One-time copy of the (constant) activation block into a single VMEM buffer.
        pltpu.sync_copy(x_hbm, x_vmem)
        # f32 output block doubles as the accumulator (resident across the H axis).
        out_ref[...] = jnp.zeros_like(out_ref)

    # ---- Linear 1 tile: (B, D_in) @ (D_in, tk) -> f32 on the MXU ----
    # (b1 add intentionally dropped: BN's batch-mean subtraction cancels it.)
    h = jnp.dot(x_vmem[...], w1_ref[...], preferred_element_type=jnp.float32)

    # ---- BatchNorm1d (training-mode biased batch stats), two-pass variance ----
    inv_b = 1.0 / h.shape[0]
    mean = jnp.sum(h, axis=0, keepdims=True) * inv_b            # (1, tk)
    centered = h - mean
    var = jnp.sum(centered * centered, axis=0, keepdims=True) * inv_b

    gb = gb_ref[...]                                            # (2, tk): [gamma; beta]
    scale = gb[0:1, :] * jax.lax.rsqrt(var + 1e-5)              # (1, tk)
    beta = gb[1:2, :]                                           # (1, tk)

    # ---- folded BN affine + ReLU ----
    h = jnp.maximum(centered * scale + beta, 0.0)

    # ---- Linear 2 tile (no bias): accumulate (B, tk) @ (tk, D_out) into out_ref ----
    out_ref[...] += jnp.dot(h.astype(jnp.bfloat16), w2_ref[...],
                            preferred_element_type=jnp.float32)

    # ---- epilogue: F.normalize(dim=1) == y / max(||y||_2, 1e-12), in place ----
    @pl.when(k == pl.num_programs(0) - 1)
    def _():
        y = out_ref[...]
        sumsq = jnp.sum(y * y, axis=1, keepdims=True)
        inv_norm = jax.lax.rsqrt(jnp.maximum(sumsq, 1e-24))     # == 1/max(norm, 1e-12)
        out_ref[...] = y * inv_norm


def _round_up(x, m):
    return (x + m - 1) // m * m


def _pad2(a, shape):
    """Zero-pad a 2-D array up to `shape` (trailing pad only)."""
    if tuple(a.shape) == tuple(shape):
        return a
    return jnp.pad(a, [(0, t - s) for s, t in zip(a.shape, shape)])


def _vmem_cap_bytes():
    """Usable VMEM budget derived from the actual chip (v7x 64 MiB vs v5e/v6e 128 MiB)."""
    cap = 64 * 1024 * 1024
    try:
        info = pltpu.get_tpu_info()
        cap = int(getattr(info, "vmem_capacity_bytes", cap))
    except Exception:
        pass
    return int(cap * 0.75)  # leave headroom for compiler-internal scratch


def _vmem_bytes_needed(B, D_in, D_out, tk):
    """Conservative per-step VMEM footprint, including in-kernel intermediates."""
    x_buf = B * D_in * 2                 # single-buffered bf16 VMEM scratch
    w1_buf = 2 * D_in * tk * 2           # double-buffered bf16 w1 tile
    w2_buf = 2 * tk * D_out * 2          # double-buffered bf16 w2 tile
    gb_buf = 2 * 8 * tk * 4              # (2, tk) f32 tile, sublane-padded to 8
    out_buf = 2 * B * D_out * 4          # f32 output/accumulator block
    interm = B * tk * (4 + 4 + 2)        # h (f32), centered (f32), bf16 cast of h
    return x_buf + w1_buf + w2_buf + gb_buf + out_buf + interm


def _pick_tile(Hp, B, D_in, Dp, cap):
    """Largest H tile (multiple of 128, preferring multiples of 256) that fits VMEM."""
    cands = [t for t in range(128, min(Hp, 2048) + 1, 128) if Hp % t == 0]
    fitting = [t for t in cands if _vmem_bytes_needed(B, D_in, Dp, t) <= cap]
    pool = fitting if fitting else [min(cands)]
    return max(pool, key=lambda t: (t % 256 == 0, t))


def projection_forward(x, w1, b1, gamma, beta, w2, *, tk=None):
    del b1  # BN's batch-mean subtraction exactly cancels the Linear-1 bias.
    B, D_in = x.shape
    H, D_out = w2.shape
    assert w1.shape == (D_in, H)

    # Pad H / D_out to multiples of 128 (zero weights, gamma=beta=0 for padded
    # features) so tiling and stores stay lane-dense.
    Hp = _round_up(H, 128)
    Dp = _round_up(D_out, 128)

    # Stream weights/activations in bf16 (MXU-native); stats/epilogue stay f32.
    x_bf = x.astype(jnp.bfloat16)
    w1_bf = _pad2(w1.astype(jnp.bfloat16), (D_in, Hp))
    w2_bf = _pad2(w2.astype(jnp.bfloat16), (Hp, Dp))
    gb = jnp.zeros((2, Hp), jnp.float32)
    gb = gb.at[0, :H].set(gamma.reshape(-1).astype(jnp.float32))
    gb = gb.at[1, :H].set(beta.reshape(-1).astype(jnp.float32))

    cap = _vmem_cap_bytes()
    if tk is None:
        tk = _pick_tile(Hp, B, D_in, Dp, cap)
    assert Hp % tk == 0, "padded hidden dim must be divisible by the H tile"
    grid = (Hp // tk,)

    needed = _vmem_bytes_needed(B, D_in, Dp, tk)
    vmem_limit = max(min(int(needed * 1.3) + (2 << 20), cap), 16 << 20)

    cost = pl.CostEstimate(
        flops=2 * B * (D_in * Hp + Hp * Dp),
        transcendentals=0,
        bytes_accessed=(x_bf.size * 2 + w1_bf.size * 2 + w2_bf.size * 2
                        + gb.size * 4 + B * Dp * 4),
    )

    out = pl.pallas_call(
        projection_kernel,
        out_shape=jax.ShapeDtypeStruct((B, Dp), jnp.float32),
        grid=grid,
        in_specs=[
            pl.BlockSpec(memory_space=pl.ANY),            # x: raw HBM, copied once
            pl.BlockSpec((D_in, tk), lambda k: (0, k)),   # w1 tile
            pl.BlockSpec((2, tk), lambda k: (0, k)),      # packed gamma/beta tile
            pl.BlockSpec((tk, Dp), lambda k: (k, 0)),     # w2 tile
        ],
        out_specs=pl.BlockSpec((B, Dp), lambda k: (0, 0)),
        scratch_shapes=[pltpu.VMEM((B, D_in), jnp.bfloat16)],   # single-buffered x
        compiler_params=pltpu.CompilerParams(
            dimension_semantics=("arbitrary",),           # H is a carried reduction
            vmem_limit_bytes=vmem_limit,
        ),
        cost_estimate=cost,
    )(x_bf, w1_bf, gb, w2_bf)

    if Dp != D_out:
        out = out[:, :D_out]  # padded cols are exactly zero; row norms unaffected
    return out


def init_params(key, input_dim, hidden_dim, output_dim):
    """Deterministic init matching the PyTorch module's parameter shapes.
    nn.Linear default: U(-1/sqrt(fan_in), 1/sqrt(fan_in)); BN: gamma=1, beta=0."""
    k1, k2, k3 = jax.random.split(key, 3)
    bound1 = 1.0 / (input_dim ** 0.5)
    w1 = jax.random.uniform(k1, (input_dim, hidden_dim), jnp.float32, -bound1, bound1)
    b1 = jax.random.uniform(k2, (1, hidden_dim), jnp.float32, -bound1, bound1)
    gamma = jnp.ones((1, hidden_dim), jnp.float32)
    beta = jnp.zeros((1, hidden_dim), jnp.float32)
    bound2 = 1.0 / (hidden_dim ** 0.5)
    w2 = jax.random.uniform(k3, (hidden_dim, output_dim), jnp.float32, -bound2, bound2)
    return w1, b1, gamma, beta, w2


def reference(x, w1, b1, gamma, beta, w2):
    """Pure-JAX f32 reference of the PyTorch forward (training-mode BN)."""
    h = x @ w1 + b1
    mean = jnp.mean(h, axis=0, keepdims=True)
    var = jnp.mean((h - mean) ** 2, axis=0, keepdims=True)
    h = (h - mean) * jax.lax.rsqrt(var + 1e-5) * gamma + beta
    h = jnp.maximum(h, 0.0)
    y = h @ w2
    norm = jnp.maximum(jnp.sqrt(jnp.sum(y * y, axis=1, keepdims=True)), 1e-12)
    return y / norm


if __name__ == "__main__":
    # Small shapes consistent with the module's forward: x is (batch, input_dim).
    B, INPUT_DIM, HIDDEN_DIM, OUTPUT_DIM = 8, 256, 512, 128

    key = jax.random.PRNGKey(0)
    kx, kp = jax.random.split(key)
    x = jax.random.normal(kx, (B, INPUT_DIM), jnp.float32)
    w1, b1, gamma, beta, w2 = init_params(kp, INPUT_DIM, HIDDEN_DIM, OUTPUT_DIM)

    # tk=128 -> grid=(4,) exercises the pipelined H-reduction / accumulate-into-out path.
    out = projection_forward(x, w1, b1, gamma, beta, w2, tk=128)
    out = jax.block_until_ready(out)
    ref = reference(x, w1, b1, gamma, beta, w2)

    row_norms = jnp.sqrt(jnp.sum(out * out, axis=1))
    assert out.shape == (B, OUTPUT_DIM)
    assert bool(jnp.all(jnp.abs(row_norms - 1.0) < 1e-3))
    assert bool(jnp.max(jnp.abs(out - ref)) < 5e-2)

    # Second config: non-128-multiple hidden/output dims exercise the padding path
    # and the auto (generation-aware) tile / VMEM sizing.
    H2, DO2 = 448, 96
    w1b, b1b, gammab, betab, w2b = init_params(jax.random.PRNGKey(1), INPUT_DIM, H2, DO2)
    out2 = jax.block_until_ready(projection_forward(x, w1b, b1b, gammab, betab, w2b))
    ref2 = reference(x, w1b, b1b, gammab, betab, w2b)
    assert out2.shape == (B, DO2)
    assert bool(jnp.max(jnp.abs(out2 - ref2)) < 5e-2)

    print("KERNEL_OK")
</pallas_src>

<mosaic_0001>
module attributes {stable_mosaic.version = 11 : i64} {
  func.func @projection_kernel(%arg0: i32, %arg1: memref<8x256xbf16, #tpu.memory_space<any>>, %arg2: memref<256x128xbf16, #tpu.memory_space<vmem>>, %arg3: memref<2x128xf32, #tpu.memory_space<vmem>>, %arg4: memref<128x128xbf16, #tpu.memory_space<vmem>>, %arg5: memref<8x128xf32, #tpu.memory_space<vmem>>, %arg6: memref<8x256xbf16, #tpu.memory_space<vmem>>) attributes {dimension_semantics = [#tpu.dimension_semantics<arbitrary>], iteration_bounds = array<i64: 4>, scalar_prefetch = 0 : i64, scratch_operands = 1 : i64, tpu.core_type = #tpu.core_type<tc>, window_params = [{}, {transform_indices = @transform_1, window_bounds = array<i64: 256, 128>}, {transform_indices = @transform_2, window_bounds = array<i64: 2, 128>}, {transform_indices = @transform_3, window_bounds = array<i64: 128, 128>}, {pipeline_mode = #tpu.pipeline_mode<synchronous>, transform_indices = @transform_4, window_bounds = array<i64: 8, 128>}]} {
    %c0_i32 = arith.constant 0 : i32
    %0 = arith.cmpi eq, %arg0, %c0_i32 : i32
    %1 = arith.extui %0 : i1 to i32
    %c0_i32_0 = arith.constant 0 : i32
    %2 = arith.cmpi ne, %1, %c0_i32_0 : i32
    scf.if %2 {
      "tpu.region"() ({
        %41 = tpu.sem_alloc : memref<!tpu.dma_semaphore, #tpu.memory_space<semaphore_mem>>
        tpu.enqueue_dma source(%arg1 : memref<8x256xbf16, #tpu.memory_space<any>>) target(%arg6 : memref<8x256xbf16, #tpu.memory_space<vmem>>) target_semaphore(%41 : memref<!tpu.dma_semaphore, #tpu.memory_space<semaphore_mem>>)
        tpu.wait_dma2 semaphore(%41 : memref<!tpu.dma_semaphore, #tpu.memory_space<semaphore_mem>>) src(%arg1 : memref<8x256xbf16, #tpu.memory_space<any>>) dst(%arg6 : memref<8x256xbf16, #tpu.memory_space<vmem>>)
        tpu.yield
      }) : () -> ()
      %cst_20 = arith.constant 0.000000e+00 : f32
      %39 = vector.broadcast %cst_20 : f32 to vector<8x128xf32>
      %c0_21 = arith.constant 0 : index
      %c0_22 = arith.constant 0 : index
      %40 = vector.load %arg5[%c0_21, %c0_22] : memref<8x128xf32, #tpu.memory_space<vmem>>, vector<8x128xf32>
      tpu.vector_store %arg5[%c0_21, %c0_22], %39 {strides = array<i32>} : memref<8x128xf32, #tpu.memory_space<vmem>>, vector<8x128xf32>,
    } else {
    }
    %c0 = arith.constant 0 : index
    %c0_1 = arith.constant 0 : index
    %3 = vector.load %arg6[%c0, %c0_1] : memref<8x256xbf16, #tpu.memory_space<vmem>>, vector<8x256xbf16>
    %c0_2 = arith.constant 0 : index
    %c0_3 = arith.constant 0 : index
    %4 = vector.load %arg2[%c0_2, %c0_3] : memref<256x128xbf16, #tpu.memory_space<vmem>>, vector<256x128xbf16>
    %cst = arith.constant dense<0.000000e+00> : vector<8x128xf32>
    %5 = tpu.matmul %3, %4, %cst {dimension_numbers = #tpu.dot_dimension_numbers<[1], [0], [0], [1], [0, 0, 1, 1], [], []>} : vector<8x256xbf16>, vector<256x128xbf16>, vector<8x128xf32> -> vector<8x128xf32>
    %cst_4 = arith.constant dense<0.000000e+00> : vector<128xf32>
    %6 = vector.multi_reduction <add>, %5, %cst_4 [0] : vector<8x128xf32> to vector<128xf32>
    %7 = vector.shape_cast %6 : vector<128xf32> to vector<1x128xf32>
    %cst_5 = arith.constant 1.250000e-01 : f32
    %8 = vector.broadcast %cst_5 : f32 to vector<1x128xf32>
    %9 = arith.mulf %7, %8 : vector<1x128xf32>
    %10 = vector.broadcast %9 : vector<1x128xf32> to vector<8x128xf32>
    %11 = arith.subf %5, %10 : vector<8x128xf32>
    %12 = arith.mulf %11, %11 : vector<8x128xf32>
    %cst_6 = arith.constant dense<0.000000e+00> : vector<128xf32>
    %13 = vector.multi_reduction <add>, %12, %cst_6 [0] : vector<8x128xf32> to vector<128xf32>
    %14 = vector.shape_cast %13 : vector<128xf32> to vector<1x128xf32>
    %cst_7 = arith.constant 1.250000e-01 : f32
    %15 = vector.broadcast %cst_7 : f32 to vector<1x128xf32>
    %16 = arith.mulf %14, %15 : vector<1x128xf32>
    %c0_8 = arith.constant 0 : index
    %c0_9 = arith.constant 0 : index
    %17 = vector.load %arg3[%c0_8, %c0_9] : memref<2x128xf32, #tpu.memory_space<vmem>>, vector<2x128xf32>
    %18 = vector.extract_strided_slice %17 {offsets = [0, 0], sizes = [1, 128], strides = [1, 1]} : vector<2x128xf32> to vector<1x128xf32>
    %cst_10 = arith.constant 9.99999974E-6 : f32
    %19 = vector.broadcast %cst_10 : f32 to vector<1x128xf32>
    %20 = arith.addf %16, %19 : vector<1x128xf32>
    %21 = math.rsqrt %20 : vector<1x128xf32>
    %22 = arith.mulf %18, %21 : vector<1x128xf32>
    %23 = vector.extract_strided_slice %17 {offsets = [1, 0], sizes = [1, 128], strides = [1, 1]} : vector<2x128xf32> to vector<1x128xf32>
    %24 = vector.broadcast %22 : vector<1x128xf32> to vector<8x128xf32>
    %25 = arith.mulf %11, %24 : vector<8x128xf32>
    %26 = vector.broadcast %23 : vector<1x128xf32> to vector<8x128xf32>
    %27 = arith.addf %25, %26 : vector<8x128xf32>
    %cst_11 = arith.constant 0.000000e+00 : f32
    %28 = vector.broadcast %cst_11 : f32 to vector<8x128xf32>
    %29 = arith.maximumf %27, %28 : vector<8x128xf32>
    %c0_12 = arith.constant 0 : index
    %c0_13 = arith.constant 0 : index
    %30 = vector.load %arg5[%c0_12, %c0_13] : memref<8x128xf32, #tpu.memory_space<vmem>>, vector<8x128xf32>
    %31 = arith.truncf %29 : vector<8x128xf32> to vector<8x128xbf16>
    %c0_14 = arith.constant 0 : index
    %c0_15 = arith.constant 0 : index
    %32 = vector.load %arg4[%c0_14, %c0_15] : memref<128x128xbf16, #tpu.memory_space<vmem>>, vector<128x128xbf16>
    %cst_16 = arith.constant dense<0.000000e+00> : vector<8x128xf32>
    %33 = tpu.matmul %31, %32, %cst_16 {dimension_numbers = #tpu.dot_dimension_numbers<[1], [0], [0], [1], [0, 0, 1, 1], [], []>} : vector<8x128xbf16>, vector<128x128xbf16>, vector<8x128xf32> -> vector<8x128xf32>
    %34 = arith.addf %30, %33 : vector<8x128xf32>
    %c0_17 = arith.constant 0 : index
    %c0_18 = arith.constant 0 : index
    %35 = vector.load %arg5[%c0_17, %c0_18] : memref<8x128xf32, #tpu.memory_space<vmem>>, vector<8x128xf32>
    tpu.vector_store %arg5[%c0_17, %c0_18], %34 {strides = array<i32>} : memref<8x128xf32, #tpu.memory_space<vmem>>, vector<8x128xf32>,
    %c3_i32 = arith.constant 3 : i32
    %36 = arith.cmpi eq, %arg0, %c3_i32 : i32
    %37 = arith.extui %36 : i1 to i32
    %c0_i32_19 = arith.constant 0 : i32
    %38 = arith.cmpi ne, %37, %c0_i32_19 : i32
    scf.if %38 {
      %c0_20 = arith.constant 0 : index
      %c0_21 = arith.constant 0 : index
      %39 = vector.load %arg5[%c0_20, %c0_21] : memref<8x128xf32, #tpu.memory_space<vmem>>, vector<8x128xf32>
      %40 = arith.mulf %39, %39 : vector<8x128xf32>
      %cst_22 = arith.constant dense<0.000000e+00> : vector<8xf32>
      %41 = vector.multi_reduction <add>, %40, %cst_22 [1] : vector<8x128xf32> to vector<8xf32>
      %42 = vector.shape_cast %41 : vector<8xf32> to vector<8x1xf32>
      %cst_23 = arith.constant 1.000000e-24 : f32
      %43 = vector.broadcast %cst_23 : f32 to vector<8x1xf32>
      %44 = arith.maximumf %42, %43 : vector<8x1xf32>
      %45 = math.rsqrt %44 : vector<8x1xf32>
      %46 = vector.broadcast %45 : vector<8x1xf32> to vector<8x128xf32>
      %47 = arith.mulf %39, %46 : vector<8x128xf32>
      %c0_24 = arith.constant 0 : index
      %c0_25 = arith.constant 0 : index
      %48 = vector.load %arg5[%c0_24, %c0_25] : memref<8x128xf32, #tpu.memory_space<vmem>>, vector<8x128xf32>
      tpu.vector_store %arg5[%c0_24, %c0_25], %47 {strides = array<i32>} : memref<8x128xf32, #tpu.memory_space<vmem>>, vector<8x128xf32>,
    } else {
    }
    return
  }
  func.func @transform_1(%arg0: i32) -> (i32, i32) {
    %c0_i32 = arith.constant 0 : i32
    %c0_i32_0 = arith.constant 0 : i32
    return %c0_i32, %arg0 : i32, i32
  }
  func.func @transform_2(%arg0: i32) -> (i32, i32) {
    %c0_i32 = arith.constant 0 : i32
    %c0_i32_0 = arith.constant 0 : i32
    return %c0_i32, %arg0 : i32, i32
  }
  func.func @transform_3(%arg0: i32) -> (i32, i32) {
    %c0_i32 = arith.constant 0 : i32
    %c0_i32_0 = arith.constant 0 : i32
    return %arg0, %c0_i32 : i32, i32
  }
  func.func @transform_4(%arg0: i32) -> (i32, i32) {
    %c0_i32 = arith.constant 0 : i32
    %c0_i32_0 = arith.constant 0 : i32
    %c0_i32_1 = arith.constant 0 : i32
    return %c0_i32, %c0_i32_0 : i32, i32
  }
}

</mosaic_0001>

<llo_original>
// kernel: tpu_custom_call.1
$region0: #{tpu_custom_call.1}
  #allocation0 [shape = 'u32[]', space=smem, size = 0x4, offset = 0x4, fixed_abs, tag = 'smem constant byte address 0x4 - core index']
  #allocation1 [shape = 'u32[144,128]{1,0:T(1,128)}', space=vmem, size = 0x12000, scoped, tag = 'internal scratch']
  #allocation2 [shape = 'bf16[8,256]{1,0:T(8,128)(2,1)}', space=vmem, size = 0x1000, scoped, tag = 'scratch operand']
  #allocation11 [shape = 's32[]', space=sflag, size = 0x4, offset = 0, fixed_abs, tag = 'sflag constant byte address 0x0 - dummy sync flag']
  #allocation12 [shape = 's32[]', space=sflag, size = 0x4, offset = 0, fixed_abs, tag = 'sflag constant byte address 0x0 - dummy sync flag']
  #allocation13 [shape = 'u32[]', space=smem, size = 0x4, offset = 0x44, fixed_abs, tag = 'smem constant byte address 0x44 - assertion arg 0']
  #allocation14 [shape = 'u32[]', space=smem, size = 0x4, offset = 0x48, fixed_abs, tag = 'smem constant byte address 0x48 - assertion arg 1']
  %s0 = inlined_call_operand.hbm [shape: bf16[8,256], index: 0, kind: input, shape index: {}]
  %s1 = inlined_call_operand.hbm [shape: bf16[256,512], index: 1, kind: input, shape index: {}]
  %s2 = inlined_call_operand.hbm [shape: f32[2,512], index: 2, kind: input, shape index: {}]
  %s3 = inlined_call_operand.hbm [shape: bf16[512,128], index: 3, kind: input, shape index: {}]
  %s4 = inlined_call_operand.hbm [shape: f32[8,128], index: 4, kind: output, shape index: {}]
  %s5 = sld [smem:[#allocation0]]
  $region70: #{tpu_custom_call.1} parent=0
    _
  %s7 = ssub.s32 1, %s5
  %s8 = scalar_select 0, %s7, %s5
  $region1: #{tpu_custom_call.1} parent=0
    #allocation3 [shape = 'u8[131072]{0}', space=vmem, size = 0x20000, scoped, tag = 'input window, operand 1']
    #allocation4 [shape = 's32[2]{0}', space=sflag, size = 0x8, scoped, tag = 'scoped memory for tpu_custom_call.1']
    #allocation5 [shape = 's32[2]{0}', space=sflag, size = 0x8, scoped, tag = 'scoped memory for tpu_custom_call.1']
    #allocation6 [shape = 'u8[2048]{0}', space=vmem, size = 0x800, scoped, tag = 'input window, operand 2']
    #allocation7 [shape = 's32[2]{0}', space=sflag, size = 0x8, scoped, tag = 'scoped memory for tpu_custom_call.1']
    #allocation8 [shape = 'u8[65536]{0}', space=vmem, size = 0x10000, scoped, tag = 'input window, operand 3']
    #allocation9 [shape = 'u8[4096]{0}', space=vmem, size = 0x1000, scoped, tag = 'output window, operand 0, single buffered']
    %9 = vsyncpa [#allocation4], 0
    %s10 = scalar_lea.sflag [#allocation4], 1
    %11 = vsyncpa %s10, 0
    %12 = vsyncpa [#allocation7], 0
    %s13 = scalar_lea.sflag [#allocation7], 1
    %14 = vsyncpa %s13, 0
    %15 = vsyncpa [#allocation5], 0
    loop: start=0, step=1, limit=6
    $region2: #{tpu_custom_call.1} parent=1 // loop_pre_header
      _
    $region3: #{tpu_custom_call.1} parent=1 // loop_header
      %s17 = sphi 0, %s21
      %p18 = scmp.ge.s32.totalorder %s17, 6
      %s27 = sphi 0, %s29
      %s30 = sphi 0, %s27
      %s31 = sphi 0, %s30
      %s47 = sphi 0, %s31
      %s53 = sphi 0, %s55
      %s56 = sphi 0, %s53
      %s57 = sphi 0, %s56
      %s73 = sphi 0, %s57
      %s79 = sphi 0, %s81
      %s82 = sphi 0, %s79
      %s83 = sphi 0, %s82
      %s99 = sphi 0, %s83
      %s103 = sphi 0, %s103
      %s105 = sphi 0, %s103
      %s106 = sphi 0, %s105
      %s120 = sphi 0, %s106
    $region4: #{tpu_custom_call.1} parent=1 // loop_header_branch
      %20 = sbr.rel (%p18) target = $region8
    $region5: #{tpu_custom_call.1} parent=1 // loop_body
      %s22 = ssub.s32 %s17, 1
      %s23 = ssub.s32 %s17, 2
      %s24 = sadd.s32 %s17, 1
      %s25 = ssub.s32 %s17, %s24
      %p26 = scmp.eq.s32.totalorder %s25, 0
      %s28 = sadd.s32 %s27, 1
      %s29 = scalar_select %p26, %s27, %s28
      %p32 = pneg %p26
      %p33 = scmp.eq.s32.totalorder %s17, 3
      %p34 = por %p32, %p33
      %p35 = scmp.ne.s32.totalorder %s27, %s30
      %p36 = scmp.eq.s32.totalorder %s17, 0
      %p37 = por %p35, %p36
      %p38 = scmp.ne.s32.totalorder %s27, %s30
      %p39 = scmp.eq.s32.totalorder %s22, 3
      %p40 = por %p38, %p39
      %p41 = scmp.ne.s32.totalorder %s30, %s31
      %p42 = scmp.eq.s32.totalorder %s22, 0
      %p43 = por %p41, %p42
      %p44 = scmp.ne.s32.totalorder %s30, %s31
      %p45 = scmp.eq.s32.totalorder %s23, 3
      %p46 = por %p44, %p45
      %p48 = scmp.ne.s32.totalorder %s31, %s47
      %p49 = scmp.eq.s32.totalorder %s23, 0
      %p50 = por %p48, %p49
      %s51 = ssub.s32 %s17, %s24
      %p52 = scmp.eq.s32.totalorder %s51, 0
      %s54 = sadd.s32 %s53, 1
      %s55 = scalar_select %p52, %s53, %s54
      %p58 = pneg %p52
      %p59 = scmp.eq.s32.totalorder %s17, 3
      %p60 = por %p58, %p59
      %p61 = scmp.ne.s32.totalorder %s53, %s56
      %p62 = scmp.eq.s32.totalorder %s17, 0
      %p63 = por %p61, %p62
      %p64 = scmp.ne.s32.totalorder %s53, %s56
      %p65 = scmp.eq.s32.totalorder %s22, 3
      %p66 = por %p64, %p65
      %p67 = scmp.ne.s32.totalorder %s56, %s57
      %p68 = scmp.eq.s32.totalorder %s22, 0
      %p69 = por %p67, %p68
      %p70 = scmp.ne.s32.totalorder %s56, %s57
      %p71 = scmp.eq.s32.totalorder %s23, 3
      %p72 = por %p70, %p71
      %p74 = scmp.ne.s32.totalorder %s57, %s73
      %p75 = scmp.eq.s32.totalorder %s23, 0
      %p76 = por %p74, %p75
      %s77 = ssub.s32 %s17, %s24
      %p78 = scmp.eq.s32.totalorder %s77, 0
      %s80 = sadd.s32 %s79, 1
      %s81 = scalar_select %p78, %s79, %s80
      %p84 = pneg %p78
      %p85 = scmp.eq.s32.totalorder %s17, 3
      %p86 = por %p84, %p85
      %p87 = scmp.ne.s32.totalorder %s79, %s82
      %p88 = scmp.eq.s32.totalorder %s17, 0
      %p89 = por %p87, %p88
      %p90 = scmp.ne.s32.totalorder %s79, %s82
      %p91 = scmp.eq.s32.totalorder %s22, 3
      %p92 = por %p90, %p91
      %p93 = scmp.ne.s32.totalorder %s82, %s83
      %p94 = scmp.eq.s32.totalorder %s22, 0
      %p95 = por %p93, %p94
      %p96 = scmp.ne.s32.totalorder %s82, %s83
      %p97 = scmp.eq.s32.totalorder %s23, 3
      %p98 = por %p96, %p97
      %p100 = scmp.ne.s32.totalorder %s83, %s99
      %p101 = scmp.eq.s32.totalorder %s23, 0
      %p102 = por %p100, %p101
      %s104 = sadd.s32 %s103, 1
      %p107 = scmp.eq.s32.totalorder %s17, 3
      %p108 = scmp.ne.s32.totalorder %s103, %s105
      %p109 = scmp.eq.s32.totalorder %s17, 0
      %p110 = por %p108, %p109
      %p111 = scmp.ne.s32.totalorder %s103, %s105
      %p112 = scmp.eq.s32.totalorder %s22, 3
      %p113 = por %p111, %p112
      %p114 = scmp.ne.s32.totalorder %s105, %s106
      %p115 = scmp.eq.s32.totalorder %s22, 0
      %p116 = por %p114, %p115
      %p117 = scmp.ne.s32.totalorder %s105, %s106
      %p118 = scmp.eq.s32.totalorder %s23, 3
      %p119 = por %p117, %p118
      %p121 = scmp.ne.s32.totalorder %s106, %s120
      %p122 = scmp.eq.s32.totalorder %s23, 0
      %p123 = por %p121, %p122
      %p124 = scmp.le.s32.totalorder 1, %s17
      %p125 = scmp.lt.s32.totalorder %s17, 5
      %p126 = pnand %p124, %p125
      %p127 = pneg %p126
      // Predicated region
      $region9: #{tpu_custom_call.1} parent=5 // pred_check
        _
      $region10: #{tpu_custom_call.1} parent=5 // pred_check_branch
        %129 = sbr.rel (%p126) target = $region12
      $region11: #{tpu_custom_call.1} parent=5 // pred_region
        %s130 = ssub.s32 %s17, 1
      $region12: #{tpu_custom_call.1} parent=5 // pred_fallthru
        _
      %p131 = scmp.lt.s32.totalorder %s17, 4
      // Predicated region
      $region13: #{tpu_custom_call.1} parent=5 // pred_check
        %p132 = pneg %p131
      $region14: #{tpu_custom_call.1} parent=5 // pred_check_branch
        %134 = sbr.rel (%p132) target = $region16
      $region15: #{tpu_custom_call.1} parent=5 // pred_region
        // Predicated region
        $region17: #{tpu_custom_call.1} parent=15 // pred_check
          %p135 = pneg %p37
        $region18: #{tpu_custom_call.1} parent=15 // pred_check_branch
          %137 = sbr.rel (%p135) target = $region20
        $region19: #{tpu_custom_call.1} parent=15 // pred_region
          %s138 = sand.u32 %s27, 1
          %s139 = scalar_lea.sflag [#allocation4], %s138
          %s140 = sand.u32 %s27, 1
          %s141 = smul.addr %s140, 128
          %s142 = scalar_lea.vmem [#allocation3], %s141
          %s144 = ssub.s32 2048, 2048
          %145 = vsyncadd %s139, %s144
          %s146 = smul.addr %s17, 64
          %s147 = scalar_lea.hbm %s1, %s146
          %s148 = sshll.u32 %s142, 4
          %s149 = int_to_ptr.vmem [resolvable:$true] %s148
          %154 = dma.hbm_to_vmem [thread:$0]  %s147, 2048, %s149, %s139, 256, 64, 4
        $region20: #{tpu_custom_call.1} parent=15 // pred_fallthru
          _
        // Predicated region
        $region21: #{tpu_custom_call.1} parent=15 // pred_check
          %p155 = pneg %p63
        $region22: #{tpu_custom_call.1} parent=15 // pred_check_branch
          %157 = sbr.rel (%p155) target = $region24
        $region23: #{tpu_custom_call.1} parent=15 // pred_region
          %s158 = sand.u32 %s17, 1
          %s159 = scalar_lea.sflag [#allocation7], %s158
          %s160 = sand.u32 %s53, 1
          %s161 = smul.addr %s160, 2
          %s162 = scalar_lea.vmem [#allocation6], %s161
          %s164 = ssub.s32 32, 32
          %165 = vsyncadd %s159, %s164
          %s166 = smul.addr %s17, 32
          %s167 = scalar_lea.hbm %s2, %s166
          %s169 = sshll.u32 %s162, 4
          %s170 = int_to_ptr.vmem [resolvable:$true] %s169
          %172 = dma.hbm_to_vmem [thread:$0]  %s167, 32, %s170, %s159
        $region24: #{tpu_custom_call.1} parent=15 // pred_fallthru
          _
        // Predicated region
        $region25: #{tpu_custom_call.1} parent=15 // pred_check
          %p173 = pneg %p89
        $region26: #{tpu_custom_call.1} parent=15 // pred_check_branch
          %175 = sbr.rel (%p173) target = $region28
        $region27: #{tpu_custom_call.1} parent=15 // pred_region
          %s176 = sand.u32 %s17, 1
          %s177 = scalar_lea.sflag [#allocation7], %s176
          %s178 = sand.u32 %s79, 1
          %s179 = smul.addr %s178, 64
          %s180 = scalar_lea.vmem [#allocation8], %s179
          %s181 = smul.u32 16, %s17
          %s183 = ssub.s32 1024, 1024
          %184 = vsyncadd %s177, %s183
          %s185 = smul.addr %s181, 64
          %s186 = scalar_lea.hbm %s3, %s185
          %s187 = sshll.u32 %s180, 4
          %s188 = int_to_ptr.vmem [resolvable:$true] %s187
          %193 = dma.hbm_to_vmem [thread:$0]  %s186, 1024, %s188, %s177, 64, 64, 4
        $region28: #{tpu_custom_call.1} parent=15 // pred_fallthru
          _
      $region16: #{tpu_custom_call.1} parent=5 // pred_fallthru
        _
      %p194 = scmp.le.s32.totalorder 1, %s17
      %p195 = scmp.lt.s32.totalorder %s17, 5
      %p196 = pnand %p194, %p195
      %p197 = pneg %p196
      // Predicated region
      $region29: #{tpu_custom_call.1} parent=5 // pred_check
        _
      $region30: #{tpu_custom_call.1} parent=5 // pred_check_branch
        %199 = sbr.rel (%p196) target = $region32
      $region31: #{tpu_custom_call.1} parent=5 // pred_region
        %s200 = ssub.s32 %s17, 1
        %s201 = sand.u32 %s30, 1
        %s202 = scalar_lea.sflag [#allocation4], %s201
        %s203 = sand.u32 %s30, 1
        %s204 = smul.addr %s203, 128
        %s205 = scalar_lea.vmem [#allocation3], %s204
        // Predicated region
        $region33: #{tpu_custom_call.1} parent=31 // pred_check
          %p206 = pneg %p43
        $region34: #{tpu_custom_call.1} parent=31 // pred_check_branch
          %208 = sbr.rel (%p206) target = $region36
        $region35: #{tpu_custom_call.1} parent=31 // pred_region
          %209 = dma.done %s202, 2048
        $region36: #{tpu_custom_call.1} parent=31 // pred_fallthru
          _
        %s210 = sand.u32 %s22, 1
        %s211 = scalar_lea.sflag [#allocation7], %s210
        %s212 = sand.u32 %s56, 1
        %s213 = smul.addr %s212, 2
        %s214 = scalar_lea.vmem [#allocation6], %s213
        // Predicated region
        $region37: #{tpu_custom_call.1} parent=31 // pred_check
          %p215 = pneg %p69
        $region38: #{tpu_custom_call.1} parent=31 // pred_check_branch
          %217 = sbr.rel (%p215) target = $region40
        $region39: #{tpu_custom_call.1} parent=31 // pred_region
          %218 = dma.done %s211, 32
        $region40: #{tpu_custom_call.1} parent=31 // pred_fallthru
          _
        %s219 = sand.u32 %s22, 1
        %s220 = scalar_lea.sflag [#allocation7], %s219
        %s221 = sand.u32 %s82, 1
        %s222 = smul.addr %s221, 64
        %s223 = scalar_lea.vmem [#allocation8], %s222
        // Predicated region
        $region41: #{tpu_custom_call.1} parent=31 // pred_check
          %p224 = pneg %p95
        $region42: #{tpu_custom_call.1} parent=31 // pred_check_branch
          %226 = sbr.rel (%p224) target = $region44
        $region43: #{tpu_custom_call.1} parent=31 // pred_region
          %227 = dma.done %s220, 1024
        $region44: #{tpu_custom_call.1} parent=31 // pred_fallthru
          _
        %s228 = sand.u32 %s30, 1
        %s229 = scalar_lea.sflag [#allocation4], %s228
        %s230 = sand.u32 %s30, 1
        %s231 = smul.addr %s230, 128
        %s232 = scalar_lea.vmem [#allocation3], %s231
        %p233 = pneg %p43
        %p234 = pneg %p40
        %s235 = sand.u32 %s22, 1
        %s236 = scalar_lea.sflag [#allocation7], %s235
        %s237 = sand.u32 %s56, 1
        %s238 = smul.addr %s237, 2
        %s239 = scalar_lea.vmem [#allocation6], %s238
        %p240 = pneg %p69
        %p241 = pneg %p66
        %s242 = sand.u32 %s22, 1
        %s243 = scalar_lea.sflag [#allocation7], %s242
        %s244 = sand.u32 %s82, 1
        %s245 = smul.addr %s244, 64
        %s246 = scalar_lea.vmem [#allocation8], %s245
        %p247 = pneg %p95
        %p248 = pneg %p92
        %p249 = pneg %p116
        %p250 = pneg %p113
        %s251 = smul.u32 16, %s22
        %p253 = scmp.eq.s32.totalorder %s22, 0
        // Predicated region
        $region45: #{tpu_custom_call.1} parent=31 // pred_check
          %p254 = pneg %p253
        $region46: #{tpu_custom_call.1} parent=31 // pred_check_branch
          %256 = sbr.rel (%p254) target = $region48
        $region47: #{tpu_custom_call.1} parent=31 // pred_region
          $region49: #{tpu_custom_call.1} parent=47
            #allocation10 [shape = 's32[1]{0}', space=sflag, size = 0x4, scoped, tag = 'scoped memory for tpu_custom_call.1']
            // Predicated region
            $region50: #{tpu_custom_call.1} parent=49 // pred_check
              _
            $region51: #{tpu_custom_call.1} parent=49 // pred_check_branch
              %258 = sbr.rel target = $region53
            $region52: #{tpu_custom_call.1} parent=49 // pred_region
              %259 = sst [smem:[#allocation13]] [#allocation12]
              %260 = sst [smem:[#allocation14]] [#allocation11]
            $region53: #{tpu_custom_call.1} parent=49 // pred_fallthru
              _
            %262 = shalt.err (0)
            %s264 = sshll.u32 [#allocation2], 4
            %s265 = int_to_ptr.vmem [resolvable:$true] %s264
            %267 = dma.hbm_to_vmem [thread:$0]  %s0, 128, %s265, [#allocation10]
            %s268 = smul.u32 4, 1
            %s269 = smul.u32 %s268, 2
            %s270 = sshll.u32 %s269, 4
            %271 = dma.done [#allocation10], %s270
          %272 = vst [vmem:[#allocation9] sm:$0xff] 0.0
        $region48: #{tpu_custom_call.1} parent=31 // pred_fallthru
          _
        %v273 = vld [vmem:[#allocation2] sm:$0xff]
        %v274 = vld [vmem:[%s205] sm:$0xf]
        %v275 = vld [vmem:[%s205 + $0x4] sm:$0xf]
        %v276 = vld [vmem:[%s205 + $0x8] sm:$0xf]
        %v277 = vld [vmem:[%s205 + $0xc] sm:$0xf]
        %v278 = vld [vmem:[%s205 + $0x10] sm:$0xf]
        %v279 = vld [vmem:[%s205 + $0x14] sm:$0xf]
        %v280 = vld [vmem:[%s205 + $0x18] sm:$0xf]
        %v281 = vld [vmem:[%s205 + $0x1c] sm:$0xf]
        %v282 = vld [vmem:[%s205 + $0x20] sm:$0xf]
        %v283 = vld [vmem:[%s205 + $0x24] sm:$0xf]
        %v284 = vld [vmem:[%s205 + $0x28] sm:$0xf]
        %v285 = vld [vmem:[%s205 + $0x2c] sm:$0xf]
        %v286 = vld [vmem:[%s205 + $0x30] sm:$0xf]
        %v287 = vld [vmem:[%s205 + $0x34] sm:$0xf]
        %v288 = vld [vmem:[%s205 + $0x38] sm:$0xf]
        %v289 = vld [vmem:[%s205 + $0x3c] sm:$0xf]
        %v290 = vld [vmem:[%s205 + $0x40] sm:$0xf]
        %v291 = vld [vmem:[%s205 + $0x44] sm:$0xf]
        %v292 = vld [vmem:[%s205 + $0x48] sm:$0xf]
        %v293 = vld [vmem:[%s205 + $0x4c] sm:$0xf]
        %v294 = vld [vmem:[%s205 + $0x50] sm:$0xf]
        %v295 = vld [vmem:[%s205 + $0x54] sm:$0xf]
        %v296 = vld [vmem:[%s205 + $0x58] sm:$0xf]
        %v297 = vld [vmem:[%s205 + $0x5c] sm:$0xf]
        %v298 = vld [vmem:[%s205 + $0x60] sm:$0xf]
        %v299 = vld [vmem:[%s205 + $0x64] sm:$0xf]
        %v300 = vld [vmem:[%s205 + $0x68] sm:$0xf]
        %v301 = vld [vmem:[%s205 + $0x6c] sm:$0xf]
        %v302 = vld [vmem:[%s205 + $0x70] sm:$0xf]
        %v303 = vld [vmem:[%s205 + $0x74] sm:$0xf]
        %v304 = vld [vmem:[%s205 + $0x78] sm:$0xf]
        %v305 = vld [vmem:[%s205 + $0x7c] sm:$0xf]
        %v307 = vunpack.c.l.b16 %v273
        %v308 = vunpack.c.h.b16 %v273
        %v309 = vpack.c.b16 %v307, %v307
        %v310 = vpack.c.b16 %v308, %v308
        %v345 = vunpack.c.l.b16 %v274
        %v346 = vunpack.c.l.b16 %v275
        %v347 = vunpack.c.l.b16 %v276
        %v348 = vunpack.c.l.b16 %v277
        %v349 = vunpack.c.l.b16 %v278
        %v350 = vunpack.c.l.b16 %v279
        %v351 = vunpack.c.l.b16 %v280
        %v352 = vunpack.c.l.b16 %v281
        %v353 = vunpack.c.l.b16 %v282
        %v354 = vunpack.c.l.b16 %v283
        %v355 = vunpack.c.l.b16 %v284
        %v356 = vunpack.c.l.b16 %v285
        %v357 = vunpack.c.l.b16 %v286
        %v358 = vunpack.c.l.b16 %v287
        %v359 = vunpack.c.l.b16 %v288
        %v360 = vunpack.c.l.b16 %v289
        %v361 = vunpack.c.l.b16 %v290
        %v362 = vunpack.c.l.b16 %v291
        %v363 = vunpack.c.l.b16 %v292
        %v364 = vunpack.c.l.b16 %v293
        %v365 = vunpack.c.l.b16 %v294
        %v366 = vunpack.c.l.b16 %v295
        %v367 = vunpack.c.l.b16 %v296
        %v368 = vunpack.c.l.b16 %v297
        %v369 = vunpack.c.l.b16 %v298
        %v370 = vunpack.c.l.b16 %v299
        %v371 = vunpack.c.l.b16 %v300
        %v372 = vunpack.c.l.b16 %v301
        %v373 = vunpack.c.l.b16 %v302
        %v374 = vunpack.c.l.b16 %v303
        %v375 = vunpack.c.l.b16 %v304
        %v376 = vunpack.c.l.b16 %v305
        %v377 = vpack.c.b16 %v346, %v345
        %v378 = vpack.c.b16 %v348, %v347
        %v379 = vpack.c.b16 %v350, %v349
        %v380 = vpack.c.b16 %v352, %v351
        %v381 = vpack.c.b16 %v354, %v353
        %v382 = vpack.c.b16 %v356, %v355
        %v383 = vpack.c.b16 %v358, %v357
        %v384 = vpack.c.b16 %v360, %v359
        %v385 = vpack.c.b16 %v362, %v361
        %v386 = vpack.c.b16 %v364, %v363
        %v387 = vpack.c.b16 %v366, %v365
        %v388 = vpack.c.b16 %v368, %v367
        %v389 = vpack.c.b16 %v370, %v369
        %v390 = vpack.c.b16 %v372, %v371
        %v391 = vpack.c.b16 %v374, %v373
        %v392 = vpack.c.b16 %v376, %v375
        %409 = vmatprep.subr.bf16.mxu0 0
        %410 = vmatpush1.bf16.msra.mxu0 %v377
        %411 = vmatprep.subr.bf16.mxu0 0
        %412 = vmatpush1.bf16.msra.mxu0 %v378
        %413 = vmatprep.subr.bf16.mxu0 0
        %414 = vmatpush1.bf16.msra.mxu0 %v379
        %415 = vmatprep.subr.bf16.mxu0 0
        %416 = vmatpush1.bf16.msra.mxu0 %v380
        %417 = vmatprep.subr.bf16.mxu0 0
        %418 = vmatpush1.bf16.msra.mxu0 %v381
        %419 = vmatprep.subr.bf16.mxu0 0
        %420 = vmatpush1.bf16.msra.mxu0 %v382
        %421 = vmatprep.subr.bf16.mxu0 0
        %422 = vmatpush1.bf16.msra.mxu0 %v383
        %423 = vmatprep.subr.bf16.mxu0 0
        %424 = vmatpush1.bf16.msra.mxu0 %v384
        %425 = vmatprep.subr.bf16.mxu0 0
        %426 = vmatpush1.bf16.msra.mxu0 %v385
        %427 = vmatprep.subr.bf16.mxu0 0
        %428 = vmatpush1.bf16.msra.mxu0 %v386
        %429 = vmatprep.subr.bf16.mxu0 0
        %430 = vmatpush1.bf16.msra.mxu0 %v387
        %431 = vmatprep.subr.bf16.mxu0 0
        %432 = vmatpush1.bf16.msra.mxu0 %v388
        %433 = vmatprep.subr.bf16.mxu0 0
        %434 = vmatpush1.bf16.msra.mxu0 %v389
        %435 = vmatprep.subr.bf16.mxu0 0
        %436 = vmatpush1.bf16.msra.mxu0 %v390
        %437 = vmatprep.subr.bf16.mxu0 0
        %438 = vmatpush1.bf16.msra.mxu0 %v391
        %439 = vmatprep.subr.bf16.mxu0 0
        %440 = vmatpush1.bf16.msra.mxu0 %v392
        %441 = vmatprep.mubr.bf16.mxu0 %v310
        %442 = vmatmul.mubr.bf16.gmra.mrb[0].mxu0 %v309
        %v443 = vpop.f32.mrb[0].mxu0
        %v444 = vadd.f32 0.0, %v443
        %v445 = vpop.f32.mrb[0].mxu0
        %v446 = vpop.f32.mrb[0].mxu0
        %v447 = vpop.f32.mrb[0].mxu0
        %448 = vdwg.mxu0
        %v449 = vrot.slane %v444, 4
        %v450 = vadd.f32 %v444, %v449
        %v451 = vrot.slane %v450, 2
        %v452 = vadd.f32 %v450, %v451
        %v453 = vrot.slane %v452, 1
        %v454 = vadd.f32 %v452, %v453
        %v455 = vmul.f32 %v454, 0.125
        %v456 = vsub.f32 %v444, %v455
        %v457 = vmul.f32 %v456, %v456
        %v458 = vrot.slane %v457, 4
        %v459 = vadd.f32 %v457, %v458
        %v460 = vrot.slane %v459, 2
        %v461 = vadd.f32 %v459, %v460
        %v462 = vrot.slane %v461, 1
        %v463 = vadd.f32 %v461, %v462
        %v464 = vmul.f32 %v463, 0.125
        %v465 = vld [vmem:[%s214] sm:$0x3]
        %v466 = vadd.f32 %v464, 1e-05
        %v467 = vrsqrt.pop %v466
        %v468 = vmul.f32 %v465, %v467
        %v469 = vlaneseq
        %v470 = vshrl.u32 %v469, 7
        %v471 = vsub.s32 0, %v470
        %v472 = vrot.slane %v468, %v471
        %v473 = vmul.f32 %v456, %v472
        %v474 = vlaneseq
        %v475 = vshrl.u32 %v474, 7
        %v476 = vsub.s32 1, %v475
        %v477 = vrot.slane %v465, %v476
        %v478 = vadd.f32 %v473, %v477
        %v479 = vmax.f32 %v478, 0.0
        %v480 = vld [vmem:[#allocation9] sm:$0xff]
        %v481 = vpack.c.bf16 %v479, %v479
        %v482 = vld [vmem:[%s223] sm:$0xf]
        %v483 = vld [vmem:[%s223 + $0x4] sm:$0xf]
        %v484 = vld [vmem:[%s223 + $0x8] sm:$0xf]
        %v485 = vld [vmem:[%s223 + $0xc] sm:$0xf]
        %v486 = vld [vmem:[%s223 + $0x10] sm:$0xf]
        %v487 = vld [vmem:[%s223 + $0x14] sm:$0xf]
        %v488 = vld [vmem:[%s223 + $0x18] sm:$0xf]
        %v489 = vld [vmem:[%s223 + $0x1c] sm:$0xf]
        %v490 = vld [vmem:[%s223 + $0x20] sm:$0xf]
        %v491 = vld [vmem:[%s223 + $0x24] sm:$0xf]
        %v492 = vld [vmem:[%s223 + $0x28] sm:$0xf]
        %v493 = vld [vmem:[%s223 + $0x2c] sm:$0xf]
        %v494 = vld [vmem:[%s223 + $0x30] sm:$0xf]
        %v495 = vld [vmem:[%s223 + $0x34] sm:$0xf]
        %v496 = vld [vmem:[%s223 + $0x38] sm:$0xf]
        %v497 = vld [vmem:[%s223 + $0x3c] sm:$0xf]
        %v514 = vunpack.c.l.b16 %v482
        %v515 = vunpack.c.l.b16 %v483
        %v516 = vunpack.c.l.b16 %v484
        %v517 = vunpack.c.l.b16 %v485
        %v518 = vunpack.c.l.b16 %v486
        %v519 = vunpack.c.l.b16 %v487
        %v520 = vunpack.c.l.b16 %v488
        %v521 = vunpack.c.l.b16 %v489
        %v522 = vunpack.c.l.b16 %v490
        %v523 = vunpack.c.l.b16 %v491
        %v524 = vunpack.c.l.b16 %v492
        %v525 = vunpack.c.l.b16 %v493
        %v526 = vunpack.c.l.b16 %v494
        %v527 = vunpack.c.l.b16 %v495
        %v528 = vunpack.c.l.b16 %v496
        %v529 = vunpack.c.l.b16 %v497
        %v530 = vpack.c.b16 %v515, %v514
        %v531 = vpack.c.b16 %v517, %v516
        %v532 = vpack.c.b16 %v519, %v518
        %v533 = vpack.c.b16 %v521, %v520
        %v534 = vpack.c.b16 %v523, %v522
        %v535 = vpack.c.b16 %v525, %v524
        %v536 = vpack.c.b16 %v527, %v526
        %v537 = vpack.c.b16 %v529, %v528
        %546 = vmatprep.subr.bf16.mxu0 0
        %547 = vmatpush1.bf16.msra.mxu0 %v530
        %548 = vmatprep.subr.bf16.mxu0 0
        %549 = vmatpush1.bf16.msra.mxu0 %v531
        %550 = vmatprep.subr.bf16.mxu0 0
        %551 = vmatpush1.bf16.msra.mxu0 %v532
        %552 = vmatprep.subr.bf16.mxu0 0
        %553 = vmatpush1.bf16.msra.mxu0 %v533
        %554 = vmatprep.subr.bf16.mxu0 0
        %555 = vmatpush1.bf16.msra.mxu0 %v534
        %556 = vmatprep.subr.bf16.mxu0 0
        %557 = vmatpush1.bf16.msra.mxu0 %v535
        %558 = vmatprep.subr.bf16.mxu0 0
        %559 = vmatpush1.bf16.msra.mxu0 %v536
        %560 = vmatprep.subr.bf16.mxu0 0
        %561 = vmatpush1.bf16.msra.mxu0 %v537
        %562 = vmatprep.subr.bf16.mxu0 0
        %563 = vmatpush1.bf16.msra.mxu0 0
        %564 = vmatprep.subr.bf16.mxu0 0
        %565 = vmatpush1.bf16.msra.mxu0 0
        %566 = vmatprep.subr.bf16.mxu0 0
        %567 = vmatpush1.bf16.msra.mxu0 0
        %568 = vmatprep.subr.bf16.mxu0 0
        %569 = vmatpush1.bf16.msra.mxu0 0
        %570 = vmatprep.subr.bf16.mxu0 0
        %571 = vmatpush1.bf16.msra.mxu0 0
        %572 = vmatprep.subr.bf16.mxu0 0
        %573 = vmatpush1.bf16.msra.mxu0 0
        %574 = vmatprep.subr.bf16.mxu0 0
        %575 = vmatpush1.bf16.msra.mxu0 0
        %576 = vmatprep.subr.bf16.mxu0 0
        %577 = vmatpush1.bf16.msra.mxu0 0
        %578 = vmatprep.mubr.bf16.mxu0 0
        %579 = vmatmul.mubr.bf16.gmra.mrb[0].mxu0 %v481
        %v580 = vpop.f32.mrb[0].mxu0
        %v581 = vadd.f32 0.0, %v580
        %v582 = vpop.f32.mrb[0].mxu0
        %v583 = vpop.f32.mrb[0].mxu0
        %v584 = vpop.f32.mrb[0].mxu0
        %585 = vdwg.mxu0
        %v586 = vadd.f32 %v480, %v581
        %587 = vst [vmem:[#allocation9] sm:$0xff] %v586
        %p588 = scmp.eq.s32.totalorder %s22, 3
        // Predicated region
        $region54: #{tpu_custom_call.1} parent=31 // pred_check
          %p589 = pneg %p588
        $region55: #{tpu_custom_call.1} parent=31 // pred_check_branch
          %591 = sbr.rel (%p589) target = $region57
        $region56: #{tpu_custom_call.1} parent=31 // pred_region
          %v592 = vld [vmem:[#allocation9] sm:$0xff]
          %v593 = vmul.f32 %v592, %v592
          %594 = vadd.xlane.f32.xlu0 %v593
          %v595 = vpop.xlane.xlu0 %594
          %v596 = vmax.f32 %v595, 1e-24
          %v597 = vrsqrt.pop %v596
          %v598 = vmul.f32 %v592, %v597
          %599 = vst [vmem:[#allocation9] sm:$0xff] %v598
        $region57: #{tpu_custom_call.1} parent=31 // pred_fallthru
          _
        // Predicated region
        $region58: #{tpu_custom_call.1} parent=31 // pred_check
          %p600 = pneg %p113
        $region59: #{tpu_custom_call.1} parent=31 // pred_check_branch
          %602 = sbr.rel (%p600) target = $region61
        $region60: #{tpu_custom_call.1} parent=31 // pred_region
          %s604 = ssub.s32 128, 128
          %605 = vsyncadd [#allocation5], %s604
          %s607 = sshll.u32 [#allocation9], 4
          %s608 = int_to_ptr.vmem [resolvable:$true] %s607
          %610 = dma.vmem_to_hbm [thread:$0]  %s608, 128, %s4, [#allocation5]
        $region61: #{tpu_custom_call.1} parent=31 // pred_fallthru
          _
        // Predicated region
        $region62: #{tpu_custom_call.1} parent=31 // pred_check
          %p611 = pneg %p113
        $region63: #{tpu_custom_call.1} parent=31 // pred_check_branch
          %613 = sbr.rel (%p611) target = $region65
        $region64: #{tpu_custom_call.1} parent=31 // pred_region
          %614 = dma.done [#allocation5], 128
        $region65: #{tpu_custom_call.1} parent=31 // pred_fallthru
          _
      $region32: #{tpu_custom_call.1} parent=5 // pred_fallthru
        _
      %p615 = scmp.le.s32.totalorder 2, %s17
      // Predicated region
      $region66: #{tpu_custom_call.1} parent=5 // pred_check
        %p616 = pneg %p615
      $region67: #{tpu_custom_call.1} parent=5 // pred_check_branch
        %618 = sbr.rel (%p616) target = $region69
      $region68: #{tpu_custom_call.1} parent=5 // pred_region
        %s619 = ssub.s32 %s17, 2
      $region69: #{tpu_custom_call.1} parent=5 // pred_fallthru
        _
    $region6: #{tpu_custom_call.1} parent=1 // loop_footer
      %s21 = sadd.s32 1, %s17
    $region7: #{tpu_custom_call.1} parent=1 // loop_footer_branch
      %16 = sbr.rel target = $region3
    $region8: #{tpu_custom_call.1} parent=1 // loop_exit
      _
    %620 = vsyncpa [#allocation4], 1
    %s621 = scalar_lea.sflag [#allocation4], 1
    %622 = vsyncpa %s621, 1
    %623 = vsyncpa [#allocation7], 1
    %s624 = scalar_lea.sflag [#allocation7], 1
    %625 = vsyncpa %s624, 1
    %626 = vsyncpa [#allocation5], 1
    %s627 = scalar_lea.sflag [#allocation5], 1
    %628 = vsyncpa %s627, 1

</llo_original>
